<compile_context>
chip_gen: v7x
topology: tpu7x:2x2x1
jax: 0.10.0
libtpu: 0.0.40
codegen_flags: <defaults>
</compile_context>

<pallas_src>
import jax
import jax.numpy as jnp
from jax import lax
from jax.experimental import pallas as pl
from jax.experimental.pallas import tpu as pltpu

STRIDE = 2
PADDING = 1
KH = KW = 3
IC = 1
OC = 2


def _convt_hs_kernel(x_ref, w_ref, b_ref, o_ref, pad_ref):
    # x_ref:   VMEM (1, H, W)           current batch image (raw, no zero-insert)
    # w_ref:   SMEM (OC*KH*KW,)         flattened forward-conv (flipped) weights
    # b_ref:   SMEM (OC,)               bias
    # o_ref:   VMEM (1, OC, 4, H, W)    4 phase planes per output channel
    # pad_ref: VMEM (H+1, W+1)          scratch: x padded by one zero row/col
    H = x_ref.shape[1]
    W = x_ref.shape[2]

    x = x_ref[0]                                   # (H, W)

    # Build a zero-padded copy once so the +1-shifted patches stay in range.
    # (The padded row/col only feeds outputs that are cropped away.)
    pad_ref[...] = jnp.zeros_like(pad_ref)
    pad_ref[pl.ds(0, H), pl.ds(0, W)] = x

    # Shared shifted patches, computed ONCE, reused for both oc and all phases.
    x00 = x                                        # x[a,   b  ]
    x01 = pad_ref[pl.ds(0, H), pl.ds(1, W)]        # x[a,   b+1]
    x10 = pad_ref[pl.ds(1, H), pl.ds(0, W)]        # x[a+1, b  ]
    x11 = pad_ref[pl.ds(1, H), pl.ds(1, W)]        # x[a+1, b+1]

    for oc in range(OC):
        # Hoisted scalar reads: forward-conv kernel wc[kh, kw] = w_ref[oc*9 + kh*3 + kw]
        base = oc * (KH * KW)
        w00 = w_ref[base + 0]
        w01 = w_ref[base + 1]
        w02 = w_ref[base + 2]
        w10 = w_ref[base + 3]
        w11 = w_ref[base + 4]
        w12 = w_ref[base + 5]
        w20 = w_ref[base + 6]
        w21 = w_ref[base + 7]
        w22 = w_ref[base + 8]
        shift = b_ref[oc] + 3.0                    # bias folded into the "+3"

        # Polyphase planes (only the non-zero taps of the transposed conv):
        #   out[2a,   2b  ] = wc[1,1]*x[a,b]
        #   out[2a,   2b+1] = wc[1,0]*x[a,b] + wc[1,2]*x[a,b+1]
        #   out[2a+1, 2b  ] = wc[0,1]*x[a,b] + wc[2,1]*x[a+1,b]
        #   out[2a+1, 2b+1] = wc[0,0]*x[a,b] + wc[0,2]*x[a,b+1]
        #                   + wc[2,0]*x[a+1,b] + wc[2,2]*x[a+1,b+1]
        p00 = w11 * x00
        p01 = w10 * x00 + w12 * x01
        p10 = w01 * x00 + w21 * x10
        p11 = w00 * x00 + w02 * x01 + w20 * x10 + w22 * x11

        for p, plane in enumerate((p00, p01, p10, p11)):
            # hard-sigmoid: clamp(conv + bias + 3, 0, 6) / 6
            o_ref[0, oc, p, :, :] = jnp.clip(plane + shift, 0.0, 6.0) * (1.0 / 6.0)


def conv_transpose2d_hardsigmoid(x, w_t, b):
    """x: (N, IC, H, W) f32; w_t: (IC, OC, KH, KW) PyTorch ConvTranspose2d layout;
    b: (OC,)."""
    N, ic, H, W = x.shape
    assert ic == IC and w_t.shape == (IC, OC, KH, KW)

    OH = (H - 1) * STRIDE - 2 * PADDING + KH
    OW = (W - 1) * STRIDE - 2 * PADDING + KW

    # Equivalent forward-conv weights: flip spatially, swap to (OC, IC, KH, KW).
    w_conv = jnp.transpose(jnp.flip(w_t, axis=(2, 3)), (1, 0, 2, 3))
    w_flat = w_conv.reshape(-1).astype(jnp.float32)        # (OC*KH*KW,)
    b = b.astype(jnp.float32)
    x_sq = x.reshape(N, H, W).astype(jnp.float32)          # drop the size-1 channel

    planes = pl.pallas_call(
        _convt_hs_kernel,
        out_shape=jax.ShapeDtypeStruct((N, OC, 4, H, W), jnp.float32),
        grid=(N,),
        in_specs=[
            pl.BlockSpec((1, H, W), lambda n: (n, 0, 0)),
            pl.BlockSpec(memory_space=pltpu.MemorySpace.SMEM),
            pl.BlockSpec(memory_space=pltpu.MemorySpace.SMEM),
        ],
        out_specs=pl.BlockSpec((1, OC, 4, H, W), lambda n: (n, 0, 0, 0, 0)),
        scratch_shapes=[pltpu.VMEM((H + 1, W + 1), jnp.float32)],
        compiler_params=pltpu.CompilerParams(dimension_semantics=("parallel",)),
    )(x_sq, w_flat, b)

    # Interleave the 4 (oh%2, ow%2) phase planes -> (N, OC, 2H, 2W), crop to (OH, OW).
    y = planes.reshape(N, OC, 2, 2, H, W)                  # (n, oc, ph, pw, a, b)
    y = jnp.transpose(y, (0, 1, 4, 2, 5, 3)).reshape(N, OC, 2 * H, 2 * W)
    return y[:, :, :OH, :OW]


def _reference(x, w_t, b):
    # lax conv_transpose equivalence: lhs-dilated stride-1 conv w/ flipped kernel.
    w_conv = jnp.transpose(jnp.flip(w_t, axis=(2, 3)), (1, 0, 2, 3))
    y = lax.conv_general_dilated(
        x, w_conv,
        window_strides=(1, 1),
        padding=[(KH - 1 - PADDING, KH - 1 - PADDING),
                 (KW - 1 - PADDING, KW - 1 - PADDING)],
        lhs_dilation=(STRIDE, STRIDE),
        rhs_dilation=(1, 1),
        dimension_numbers=("NCHW", "OIHW", "NCHW"),
    ) + b.reshape(1, OC, 1, 1)
    return jnp.clip(y + 3.0, 0.0, 6.0) / 6.0


if __name__ == "__main__":
    key = jax.random.PRNGKey(0)
    kx, kw, kb = jax.random.split(key, 3)

    N, H, W = 2, 16, 16
    x = jax.random.normal(kx, (N, IC, H, W), dtype=jnp.float32)

    # Deterministic parameter init (uniform(-k, k), k = 1/sqrt(IC*KH*KW)), like PyTorch.
    bound = 1.0 / (IC * KH * KW) ** 0.5
    w_t = jax.random.uniform(kw, (IC, OC, KH, KW), jnp.float32, -bound, bound)
    b = jax.random.uniform(kb, (OC,), jnp.float32, -bound, bound)

    out = conv_transpose2d_hardsigmoid(x, w_t, b)
    out = jax.block_until_ready(out)

    ref = _reference(x, w_t, b)
    assert out.shape == (N, OC, 31, 31), out.shape
    assert jnp.allclose(out, ref, atol=1e-5, rtol=1e-5), float(jnp.max(jnp.abs(out - ref)))

    print("KERNEL_OK")
</pallas_src>

<mosaic_0001>
module attributes {stable_mosaic.version = 11 : i64} {
  func.func @_convt_hs_kernel(%arg0: i32, %arg1: memref<1x16x16xf32, #tpu.memory_space<vmem>>, %arg2: memref<18xf32, #tpu.memory_space<smem>>, %arg3: memref<2xf32, #tpu.memory_space<smem>>, %arg4: memref<1x2x4x16x16xf32, #tpu.memory_space<vmem>>, %arg5: memref<17x17xf32, #tpu.memory_space<vmem>>) attributes {dimension_semantics = [#tpu.dimension_semantics<parallel>], iteration_bounds = array<i64: 2>, scalar_prefetch = 0 : i64, scratch_operands = 1 : i64, tpu.core_type = #tpu.core_type<tc>, window_params = [{transform_indices = @transform_0, window_bounds = array<i64: 1, 16, 16>}, {transform_indices = @transform_1, window_bounds = array<i64: 18>}, {transform_indices = @transform_2, window_bounds = array<i64: 2>}, {transform_indices = @transform_3, window_bounds = array<i64: 1, 2, 4, 16, 16>}]} {
    %c0 = arith.constant 0 : index
    %c0_0 = arith.constant 0 : index
    %c0_1 = arith.constant 0 : index
    %0 = vector.load %arg1[%c0, %c0_0, %c0_1] : memref<1x16x16xf32, #tpu.memory_space<vmem>>, vector<1x16x16xf32>
    %1 = vector.shape_cast %0 : vector<1x16x16xf32> to vector<16x16xf32>
    %cst = arith.constant 0.000000e+00 : f32
    %2 = vector.broadcast %cst : f32 to vector<17x17xf32>
    %c0_2 = arith.constant 0 : index
    %c0_3 = arith.constant 0 : index
    %3 = vector.load %arg5[%c0_2, %c0_3] : memref<17x17xf32, #tpu.memory_space<vmem>>, vector<17x17xf32>
    tpu.vector_store %arg5[%c0_2, %c0_3], %2 {strides = array<i32>} : memref<17x17xf32, #tpu.memory_space<vmem>>, vector<17x17xf32>,
    %c0_4 = arith.constant 0 : index
    %c0_5 = arith.constant 0 : index
    %4 = vector.load %arg5[%c0_4, %c0_5] : memref<17x17xf32, #tpu.memory_space<vmem>>, vector<16x16xf32>
    tpu.vector_store %arg5[%c0_4, %c0_5], %1 {strides = array<i32>} : memref<17x17xf32, #tpu.memory_space<vmem>>, vector<16x16xf32>,
    %c0_6 = arith.constant 0 : index
    %c1 = arith.constant 1 : index
    %5 = vector.load %arg5[%c0_6, %c1] : memref<17x17xf32, #tpu.memory_space<vmem>>, vector<16x16xf32>
    %c1_7 = arith.constant 1 : index
    %c0_8 = arith.constant 0 : index
    %6 = vector.load %arg5[%c1_7, %c0_8] : memref<17x17xf32, #tpu.memory_space<vmem>>, vector<16x16xf32>
    %c1_9 = arith.constant 1 : index
    %c1_10 = arith.constant 1 : index
    %7 = vector.load %arg5[%c1_9, %c1_10] : memref<17x17xf32, #tpu.memory_space<vmem>>, vector<16x16xf32>
    %c0_11 = arith.constant 0 : index
    %8 = memref.load %arg2[%c0_11] : memref<18xf32, #tpu.memory_space<smem>>
    %c1_12 = arith.constant 1 : index
    %9 = memref.load %arg2[%c1_12] : memref<18xf32, #tpu.memory_space<smem>>
    %c2 = arith.constant 2 : index
    %10 = memref.load %arg2[%c2] : memref<18xf32, #tpu.memory_space<smem>>
    %c3 = arith.constant 3 : index
    %11 = memref.load %arg2[%c3] : memref<18xf32, #tpu.memory_space<smem>>
    %c4 = arith.constant 4 : index
    %12 = memref.load %arg2[%c4] : memref<18xf32, #tpu.memory_space<smem>>
    %c5 = arith.constant 5 : index
    %13 = memref.load %arg2[%c5] : memref<18xf32, #tpu.memory_space<smem>>
    %c6 = arith.constant 6 : index
    %14 = memref.load %arg2[%c6] : memref<18xf32, #tpu.memory_space<smem>>
    %c7 = arith.constant 7 : index
    %15 = memref.load %arg2[%c7] : memref<18xf32, #tpu.memory_space<smem>>
    %c8 = arith.constant 8 : index
    %16 = memref.load %arg2[%c8] : memref<18xf32, #tpu.memory_space<smem>>
    %c0_13 = arith.constant 0 : index
    %17 = memref.load %arg3[%c0_13] : memref<2xf32, #tpu.memory_space<smem>>
    %cst_14 = arith.constant 3.000000e+00 : f32
    %18 = arith.addf %17, %cst_14 : f32
    %19 = vector.broadcast %12 : f32 to vector<16x16xf32>
    %20 = arith.mulf %19, %1 : vector<16x16xf32>
    %21 = vector.broadcast %11 : f32 to vector<16x16xf32>
    %22 = arith.mulf %21, %1 : vector<16x16xf32>
    %23 = vector.broadcast %13 : f32 to vector<16x16xf32>
    %24 = arith.mulf %23, %5 : vector<16x16xf32>
    %25 = arith.addf %22, %24 : vector<16x16xf32>
    %26 = vector.broadcast %9 : f32 to vector<16x16xf32>
    %27 = arith.mulf %26, %1 : vector<16x16xf32>
    %28 = vector.broadcast %15 : f32 to vector<16x16xf32>
    %29 = arith.mulf %28, %6 : vector<16x16xf32>
    %30 = arith.addf %27, %29 : vector<16x16xf32>
    %31 = vector.broadcast %8 : f32 to vector<16x16xf32>
    %32 = arith.mulf %31, %1 : vector<16x16xf32>
    %33 = vector.broadcast %10 : f32 to vector<16x16xf32>
    %34 = arith.mulf %33, %5 : vector<16x16xf32>
    %35 = arith.addf %32, %34 : vector<16x16xf32>
    %36 = vector.broadcast %14 : f32 to vector<16x16xf32>
    %37 = arith.mulf %36, %6 : vector<16x16xf32>
    %38 = arith.addf %35, %37 : vector<16x16xf32>
    %39 = vector.broadcast %16 : f32 to vector<16x16xf32>
    %40 = arith.mulf %39, %7 : vector<16x16xf32>
    %41 = arith.addf %38, %40 : vector<16x16xf32>
    %42 = vector.broadcast %18 : f32 to vector<16x16xf32>
    %43 = arith.addf %20, %42 : vector<16x16xf32>
    %cst_15 = arith.constant 0.000000e+00 : f32
    %cst_16 = arith.constant 6.000000e+00 : f32
    %44 = vector.broadcast %cst_15 : f32 to vector<16x16xf32>
    %45 = arith.maximumf %44, %43 : vector<16x16xf32>
    %46 = vector.broadcast %cst_16 : f32 to vector<16x16xf32>
    %47 = arith.minimumf %46, %45 : vector<16x16xf32>
    %cst_17 = arith.constant 0.166666672 : f32
    %48 = vector.broadcast %cst_17 : f32 to vector<16x16xf32>
    %49 = arith.mulf %47, %48 : vector<16x16xf32>
    %c0_18 = arith.constant 0 : index
    %c0_19 = arith.constant 0 : index
    %c0_20 = arith.constant 0 : index
    %c0_21 = arith.constant 0 : index
    %c0_22 = arith.constant 0 : index
    %50 = vector.load %arg4[%c0_18, %c0_19, %c0_20, %c0_21, %c0_22] : memref<1x2x4x16x16xf32, #tpu.memory_space<vmem>>, vector<1x1x1x16x16xf32>
    %51 = vector.shape_cast %50 : vector<1x1x1x16x16xf32> to vector<16x16xf32>
    %52 = vector.shape_cast %49 : vector<16x16xf32> to vector<1x1x1x16x16xf32>
    tpu.vector_store %arg4[%c0_18, %c0_19, %c0_20, %c0_21, %c0_22], %52 {strides = array<i32>} : memref<1x2x4x16x16xf32, #tpu.memory_space<vmem>>, vector<1x1x1x16x16xf32>,
    %53 = vector.broadcast %18 : f32 to vector<16x16xf32>
    %54 = arith.addf %25, %53 : vector<16x16xf32>
    %cst_23 = arith.constant 0.000000e+00 : f32
    %cst_24 = arith.constant 6.000000e+00 : f32
    %55 = vector.broadcast %cst_23 : f32 to vector<16x16xf32>
    %56 = arith.maximumf %55, %54 : vector<16x16xf32>
    %57 = vector.broadcast %cst_24 : f32 to vector<16x16xf32>
    %58 = arith.minimumf %57, %56 : vector<16x16xf32>
    %cst_25 = arith.constant 0.166666672 : f32
    %59 = vector.broadcast %cst_25 : f32 to vector<16x16xf32>
    %60 = arith.mulf %58, %59 : vector<16x16xf32>
    %c0_26 = arith.constant 0 : index
    %c0_27 = arith.constant 0 : index
    %c1_28 = arith.constant 1 : index
    %c0_29 = arith.constant 0 : index
    %c0_30 = arith.constant 0 : index
    %61 = vector.load %arg4[%c0_26, %c0_27, %c1_28, %c0_29, %c0_30] : memref<1x2x4x16x16xf32, #tpu.memory_space<vmem>>, vector<1x1x1x16x16xf32>
    %62 = vector.shape_cast %61 : vector<1x1x1x16x16xf32> to vector<16x16xf32>
    %63 = vector.shape_cast %60 : vector<16x16xf32> to vector<1x1x1x16x16xf32>
    tpu.vector_store %arg4[%c0_26, %c0_27, %c1_28, %c0_29, %c0_30], %63 {strides = array<i32>} : memref<1x2x4x16x16xf32, #tpu.memory_space<vmem>>, vector<1x1x1x16x16xf32>,
    %64 = vector.broadcast %18 : f32 to vector<16x16xf32>
    %65 = arith.addf %30, %64 : vector<16x16xf32>
    %cst_31 = arith.constant 0.000000e+00 : f32
    %cst_32 = arith.constant 6.000000e+00 : f32
    %66 = vector.broadcast %cst_31 : f32 to vector<16x16xf32>
    %67 = arith.maximumf %66, %65 : vector<16x16xf32>
    %68 = vector.broadcast %cst_32 : f32 to vector<16x16xf32>
    %69 = arith.minimumf %68, %67 : vector<16x16xf32>
    %cst_33 = arith.constant 0.166666672 : f32
    %70 = vector.broadcast %cst_33 : f32 to vector<16x16xf32>
    %71 = arith.mulf %69, %70 : vector<16x16xf32>
    %c0_34 = arith.constant 0 : index
    %c0_35 = arith.constant 0 : index
    %c2_36 = arith.constant 2 : index
    %c0_37 = arith.constant 0 : index
    %c0_38 = arith.constant 0 : index
    %72 = vector.load %arg4[%c0_34, %c0_35, %c2_36, %c0_37, %c0_38] : memref<1x2x4x16x16xf32, #tpu.memory_space<vmem>>, vector<1x1x1x16x16xf32>
    %73 = vector.shape_cast %72 : vector<1x1x1x16x16xf32> to vector<16x16xf32>
    %74 = vector.shape_cast %71 : vector<16x16xf32> to vector<1x1x1x16x16xf32>
    tpu.vector_store %arg4[%c0_34, %c0_35, %c2_36, %c0_37, %c0_38], %74 {strides = array<i32>} : memref<1x2x4x16x16xf32, #tpu.memory_space<vmem>>, vector<1x1x1x16x16xf32>,
    %75 = vector.broadcast %18 : f32 to vector<16x16xf32>
    %76 = arith.addf %41, %75 : vector<16x16xf32>
    %cst_39 = arith.constant 0.000000e+00 : f32
    %cst_40 = arith.constant 6.000000e+00 : f32
    %77 = vector.broadcast %cst_39 : f32 to vector<16x16xf32>
    %78 = arith.maximumf %77, %76 : vector<16x16xf32>
    %79 = vector.broadcast %cst_40 : f32 to vector<16x16xf32>
    %80 = arith.minimumf %79, %78 : vector<16x16xf32>
    %cst_41 = arith.constant 0.166666672 : f32
    %81 = vector.broadcast %cst_41 : f32 to vector<16x16xf32>
    %82 = arith.mulf %80, %81 : vector<16x16xf32>
    %c0_42 = arith.constant 0 : index
    %c0_43 = arith.constant 0 : index
    %c3_44 = arith.constant 3 : index
    %c0_45 = arith.constant 0 : index
    %c0_46 = arith.constant 0 : index
    %83 = vector.load %arg4[%c0_42, %c0_43, %c3_44, %c0_45, %c0_46] : memref<1x2x4x16x16xf32, #tpu.memory_space<vmem>>, vector<1x1x1x16x16xf32>
    %84 = vector.shape_cast %83 : vector<1x1x1x16x16xf32> to vector<16x16xf32>
    %85 = vector.shape_cast %82 : vector<16x16xf32> to vector<1x1x1x16x16xf32>
    tpu.vector_store %arg4[%c0_42, %c0_43, %c3_44, %c0_45, %c0_46], %85 {strides = array<i32>} : memref<1x2x4x16x16xf32, #tpu.memory_space<vmem>>, vector<1x1x1x16x16xf32>,
    %c9 = arith.constant 9 : index
    %86 = memref.load %arg2[%c9] : memref<18xf32, #tpu.memory_space<smem>>
    %c10 = arith.constant 10 : index
    %87 = memref.load %arg2[%c10] : memref<18xf32, #tpu.memory_space<smem>>
    %c11 = arith.constant 11 : index
    %88 = memref.load %arg2[%c11] : memref<18xf32, #tpu.memory_space<smem>>
    %c12 = arith.constant 12 : index
    %89 = memref.load %arg2[%c12] : memref<18xf32, #tpu.memory_space<smem>>
    %c13 = arith.constant 13 : index
    %90 = memref.load %arg2[%c13] : memref<18xf32, #tpu.memory_space<smem>>
    %c14 = arith.constant 14 : index
    %91 = memref.load %arg2[%c14] : memref<18xf32, #tpu.memory_space<smem>>
    %c15 = arith.constant 15 : index
    %92 = memref.load %arg2[%c15] : memref<18xf32, #tpu.memory_space<smem>>
    %c16 = arith.constant 16 : index
    %93 = memref.load %arg2[%c16] : memref<18xf32, #tpu.memory_space<smem>>
    %c17 = arith.constant 17 : index
    %94 = memref.load %arg2[%c17] : memref<18xf32, #tpu.memory_space<smem>>
    %c1_47 = arith.constant 1 : index
    %95 = memref.load %arg3[%c1_47] : memref<2xf32, #tpu.memory_space<smem>>
    %cst_48 = arith.constant 3.000000e+00 : f32
    %96 = arith.addf %95, %cst_48 : f32
    %97 = vector.broadcast %90 : f32 to vector<16x16xf32>
    %98 = arith.mulf %97, %1 : vector<16x16xf32>
    %99 = vector.broadcast %89 : f32 to vector<16x16xf32>
    %100 = arith.mulf %99, %1 : vector<16x16xf32>
    %101 = vector.broadcast %91 : f32 to vector<16x16xf32>
    %102 = arith.mulf %101, %5 : vector<16x16xf32>
    %103 = arith.addf %100, %102 : vector<16x16xf32>
    %104 = vector.broadcast %87 : f32 to vector<16x16xf32>
    %105 = arith.mulf %104, %1 : vector<16x16xf32>
    %106 = vector.broadcast %93 : f32 to vector<16x16xf32>
    %107 = arith.mulf %106, %6 : vector<16x16xf32>
    %108 = arith.addf %105, %107 : vector<16x16xf32>
    %109 = vector.broadcast %86 : f32 to vector<16x16xf32>
    %110 = arith.mulf %109, %1 : vector<16x16xf32>
    %111 = vector.broadcast %88 : f32 to vector<16x16xf32>
    %112 = arith.mulf %111, %5 : vector<16x16xf32>
    %113 = arith.addf %110, %112 : vector<16x16xf32>
    %114 = vector.broadcast %92 : f32 to vector<16x16xf32>
    %115 = arith.mulf %114, %6 : vector<16x16xf32>
    %116 = arith.addf %113, %115 : vector<16x16xf32>
    %117 = vector.broadcast %94 : f32 to vector<16x16xf32>
    %118 = arith.mulf %117, %7 : vector<16x16xf32>
    %119 = arith.addf %116, %118 : vector<16x16xf32>
    %120 = vector.broadcast %96 : f32 to vector<16x16xf32>
    %121 = arith.addf %98, %120 : vector<16x16xf32>
    %cst_49 = arith.constant 0.000000e+00 : f32
    %cst_50 = arith.constant 6.000000e+00 : f32
    %122 = vector.broadcast %cst_49 : f32 to vector<16x16xf32>
    %123 = arith.maximumf %122, %121 : vector<16x16xf32>
    %124 = vector.broadcast %cst_50 : f32 to vector<16x16xf32>
    %125 = arith.minimumf %124, %123 : vector<16x16xf32>
    %cst_51 = arith.constant 0.166666672 : f32
    %126 = vector.broadcast %cst_51 : f32 to vector<16x16xf32>
    %127 = arith.mulf %125, %126 : vector<16x16xf32>
    %c0_52 = arith.constant 0 : index
    %c1_53 = arith.constant 1 : index
    %c0_54 = arith.constant 0 : index
    %c0_55 = arith.constant 0 : index
    %c0_56 = arith.constant 0 : index
    %128 = vector.load %arg4[%c0_52, %c1_53, %c0_54, %c0_55, %c0_56] : memref<1x2x4x16x16xf32, #tpu.memory_space<vmem>>, vector<1x1x1x16x16xf32>
    %129 = vector.shape_cast %128 : vector<1x1x1x16x16xf32> to vector<16x16xf32>
    %130 = vector.shape_cast %127 : vector<16x16xf32> to vector<1x1x1x16x16xf32>
    tpu.vector_store %arg4[%c0_52, %c1_53, %c0_54, %c0_55, %c0_56], %130 {strides = array<i32>} : memref<1x2x4x16x16xf32, #tpu.memory_space<vmem>>, vector<1x1x1x16x16xf32>,
    %131 = vector.broadcast %96 : f32 to vector<16x16xf32>
    %132 = arith.addf %103, %131 : vector<16x16xf32>
    %cst_57 = arith.constant 0.000000e+00 : f32
    %cst_58 = arith.constant 6.000000e+00 : f32
    %133 = vector.broadcast %cst_57 : f32 to vector<16x16xf32>
    %134 = arith.maximumf %133, %132 : vector<16x16xf32>
    %135 = vector.broadcast %cst_58 : f32 to vector<16x16xf32>
    %136 = arith.minimumf %135, %134 : vector<16x16xf32>
    %cst_59 = arith.constant 0.166666672 : f32
    %137 = vector.broadcast %cst_59 : f32 to vector<16x16xf32>
    %138 = arith.mulf %136, %137 : vector<16x16xf32>
    %c0_60 = arith.constant 0 : index
    %c1_61 = arith.constant 1 : index
    %c1_62 = arith.constant 1 : index
    %c0_63 = arith.constant 0 : index
    %c0_64 = arith.constant 0 : index
    %139 = vector.load %arg4[%c0_60, %c1_61, %c1_62, %c0_63, %c0_64] : memref<1x2x4x16x16xf32, #tpu.memory_space<vmem>>, vector<1x1x1x16x16xf32>
    %140 = vector.shape_cast %139 : vector<1x1x1x16x16xf32> to vector<16x16xf32>
    %141 = vector.shape_cast %138 : vector<16x16xf32> to vector<1x1x1x16x16xf32>
    tpu.vector_store %arg4[%c0_60, %c1_61, %c1_62, %c0_63, %c0_64], %141 {strides = array<i32>} : memref<1x2x4x16x16xf32, #tpu.memory_space<vmem>>, vector<1x1x1x16x16xf32>,
    %142 = vector.broadcast %96 : f32 to vector<16x16xf32>
    %143 = arith.addf %108, %142 : vector<16x16xf32>
    %cst_65 = arith.constant 0.000000e+00 : f32
    %cst_66 = arith.constant 6.000000e+00 : f32
    %144 = vector.broadcast %cst_65 : f32 to vector<16x16xf32>
    %145 = arith.maximumf %144, %143 : vector<16x16xf32>
    %146 = vector.broadcast %cst_66 : f32 to vector<16x16xf32>
    %147 = arith.minimumf %146, %145 : vector<16x16xf32>
    %cst_67 = arith.constant 0.166666672 : f32
    %148 = vector.broadcast %cst_67 : f32 to vector<16x16xf32>
    %149 = arith.mulf %147, %148 : vector<16x16xf32>
    %c0_68 = arith.constant 0 : index
    %c1_69 = arith.constant 1 : index
    %c2_70 = arith.constant 2 : index
    %c0_71 = arith.constant 0 : index
    %c0_72 = arith.constant 0 : index
    %150 = vector.load %arg4[%c0_68, %c1_69, %c2_70, %c0_71, %c0_72] : memref<1x2x4x16x16xf32, #tpu.memory_space<vmem>>, vector<1x1x1x16x16xf32>
    %151 = vector.shape_cast %150 : vector<1x1x1x16x16xf32> to vector<16x16xf32>
    %152 = vector.shape_cast %149 : vector<16x16xf32> to vector<1x1x1x16x16xf32>
    tpu.vector_store %arg4[%c0_68, %c1_69, %c2_70, %c0_71, %c0_72], %152 {strides = array<i32>} : memref<1x2x4x16x16xf32, #tpu.memory_space<vmem>>, vector<1x1x1x16x16xf32>,
    %153 = vector.broadcast %96 : f32 to vector<16x16xf32>
    %154 = arith.addf %119, %153 : vector<16x16xf32>
    %cst_73 = arith.constant 0.000000e+00 : f32
    %cst_74 = arith.constant 6.000000e+00 : f32
    %155 = vector.broadcast %cst_73 : f32 to vector<16x16xf32>
    %156 = arith.maximumf %155, %154 : vector<16x16xf32>
    %157 = vector.broadcast %cst_74 : f32 to vector<16x16xf32>
    %158 = arith.minimumf %157, %156 : vector<16x16xf32>
    %cst_75 = arith.constant 0.166666672 : f32
    %159 = vector.broadcast %cst_75 : f32 to vector<16x16xf32>
    %160 = arith.mulf %158, %159 : vector<16x16xf32>
    %c0_76 = arith.constant 0 : index
    %c1_77 = arith.constant 1 : index
    %c3_78 = arith.constant 3 : index
    %c0_79 = arith.constant 0 : index
    %c0_80 = arith.constant 0 : index
    %161 = vector.load %arg4[%c0_76, %c1_77, %c3_78, %c0_79, %c0_80] : memref<1x2x4x16x16xf32, #tpu.memory_space<vmem>>, vector<1x1x1x16x16xf32>
    %162 = vector.shape_cast %161 : vector<1x1x1x16x16xf32> to vector<16x16xf32>
    %163 = vector.shape_cast %160 : vector<16x16xf32> to vector<1x1x1x16x16xf32>
    tpu.vector_store %arg4[%c0_76, %c1_77, %c3_78, %c0_79, %c0_80], %163 {strides = array<i32>} : memref<1x2x4x16x16xf32, #tpu.memory_space<vmem>>, vector<1x1x1x16x16xf32>,
    return
  }
  func.func @transform_0(%arg0: i32) -> (i32, i32, i32) {
    %c0_i32 = arith.constant 0 : i32
    %c0_i32_0 = arith.constant 0 : i32
    %c0_i32_1 = arith.constant 0 : i32
    return %arg0, %c0_i32, %c0_i32_0 : i32, i32, i32
  }
  func.func @transform_1(%arg0: i32) -> i32 {
    %c0_i32 = arith.constant 0 : i32
    %c0_i32_0 = arith.constant 0 : i32
    return %c0_i32 : i32
  }
  func.func @transform_2(%arg0: i32) -> i32 {
    %c0_i32 = arith.constant 0 : i32
    %c0_i32_0 = arith.constant 0 : i32
    return %c0_i32 : i32
  }
  func.func @transform_3(%arg0: i32) -> (i32, i32, i32, i32, i32) {
    %c0_i32 = arith.constant 0 : i32
    %c0_i32_0 = arith.constant 0 : i32
    %c0_i32_1 = arith.constant 0 : i32
    %c0_i32_2 = arith.constant 0 : i32
    %c0_i32_3 = arith.constant 0 : i32
    return %arg0, %c0_i32, %c0_i32_0, %c0_i32_1, %c0_i32_2 : i32, i32, i32, i32, i32
  }
}

</mosaic_0001>

<llo_original>
// kernel: tpu_custom_call.1
$region0: #{tpu_custom_call.1}
  #allocation0 [shape = 'u32[]', space=smem, size = 0x4, offset = 0x4, fixed_abs, tag = 'smem constant byte address 0x4 - core index']
  #allocation1 [shape = 'u32[144,128]{1,0:T(1,128)}', space=vmem, size = 0x12000, scoped, tag = 'internal scratch']
  #allocation2 [shape = 'f32[17,17]{1,0:T(8,128)}', space=vmem, size = 0x3000, scoped, tag = 'scratch operand']
  %s0 = inlined_call_operand.hbm [shape: f32[2,16,16], index: 0, kind: input, shape index: {}]
  %s1 = inlined_call_operand.vmem [shape: f32[18], index: 1, kind: input, shape index: {}]
  %s2 = inlined_call_operand.vmem [shape: f32[2], index: 2, kind: input, shape index: {}]
  %s3 = inlined_call_operand.hbm [shape: f32[2,2,4,16,16], index: 3, kind: output, shape index: {}]
  %s4 = sld [smem:[#allocation0]]
  $region57: #{tpu_custom_call.1} parent=0
    _
  %s6 = ssub.s32 1, %s4
  %s7 = scalar_select 0, %s6, %s4
  $region1: #{tpu_custom_call.1} parent=0
    #allocation3 [shape = 'u8[16384]{0}', space=vmem, size = 0x4000, scoped, tag = 'input window, operand 0']
    #allocation4 [shape = 's32[2]{0}', space=sflag, size = 0x8, scoped, tag = 'scoped memory for tpu_custom_call.1']
    #allocation5 [shape = 's32[2]{0}', space=sflag, size = 0x8, scoped, tag = 'scoped memory for tpu_custom_call.1']
    #allocation6 [shape = 's32[2]{0}', space=sflag, size = 0x8, scoped, tag = 'scoped memory for tpu_custom_call.1']
    #allocation7 [shape = 'u8[512]{0}', space=smem, size = 0x200, scoped, tag = 'input window, operand 1, single buffered']
    #allocation8 [shape = 'u8[512]{0}', space=smem, size = 0x200, scoped, tag = 'input window, operand 2, single buffered']
    #allocation9 [shape = 's32[1]{0}', space=sflag, size = 0x4, scoped, tag = 'scoped memory for tpu_custom_call.1']
    #allocation10 [shape = 'u8[131072]{0}', space=vmem, size = 0x20000, scoped, tag = 'output window, operand 0']
    %8 = vsyncpa [#allocation4], 0
    %s9 = scalar_lea.sflag [#allocation4], 1
    %10 = vsyncpa %s9, 0
    %11 = vsyncpa [#allocation6], 0
    %12 = vsyncpa [#allocation9], 0
    %13 = vsyncpa [#allocation5], 0
    %s14 = scalar_lea.sflag [#allocation5], 1
    %15 = vsyncpa %s14, 0
    loop: start=0, step=1, limit=4
    $region2: #{tpu_custom_call.1} parent=1 // loop_pre_header
      _
    $region3: #{tpu_custom_call.1} parent=1 // loop_header
      %s17 = sphi 0, %s21
      %p18 = scmp.ge.s32.totalorder %s17, 4
      %s27 = sphi 0, %s29
      %s30 = sphi 0, %s27
      %s31 = sphi 0, %s30
      %s47 = sphi 0, %s31
      %s51 = sphi 0, %s51
      %s53 = sphi 0, %s51
      %s54 = sphi 0, %s53
      %s68 = sphi 0, %s54
      %s72 = sphi 0, %s72
      %s74 = sphi 0, %s72
      %s75 = sphi 0, %s74
      %s89 = sphi 0, %s75
      %s95 = sphi 0, %s97
      %s98 = sphi 0, %s95
      %s99 = sphi 0, %s98
      %s115 = sphi 0, %s99
    $region4: #{tpu_custom_call.1} parent=1 // loop_header_branch
      %20 = sbr.rel (%p18) target = $region8
    $region5: #{tpu_custom_call.1} parent=1 // loop_body
      %s22 = ssub.s32 %s17, 1
      %s23 = ssub.s32 %s17, 2
      %s24 = sadd.s32 %s17, 1
      %s25 = ssub.s32 %s17, %s24
      %p26 = scmp.eq.s32.totalorder %s25, 0
      %s28 = sadd.s32 %s27, 1
      %s29 = scalar_select %p26, %s27, %s28
      %p32 = pneg %p26
      %p33 = scmp.eq.s32.totalorder %s17, 1
      %p34 = por %p32, %p33
      %p35 = scmp.ne.s32.totalorder %s27, %s30
      %p36 = scmp.eq.s32.totalorder %s17, 0
      %p37 = por %p35, %p36
      %p38 = scmp.ne.s32.totalorder %s27, %s30
      %p39 = scmp.eq.s32.totalorder %s22, 1
      %p40 = por %p38, %p39
      %p41 = scmp.ne.s32.totalorder %s30, %s31
      %p42 = scmp.eq.s32.totalorder %s22, 0
      %p43 = por %p41, %p42
      %p44 = scmp.ne.s32.totalorder %s30, %s31
      %p45 = scmp.eq.s32.totalorder %s23, 1
      %p46 = por %p44, %p45
      %p48 = scmp.ne.s32.totalorder %s31, %s47
      %p49 = scmp.eq.s32.totalorder %s23, 0
      %p50 = por %p48, %p49
      %s52 = sadd.s32 %s51, 1
      %p55 = scmp.eq.s32.totalorder %s17, 1
      %p56 = scmp.ne.s32.totalorder %s51, %s53
      %p57 = scmp.eq.s32.totalorder %s17, 0
      %p58 = por %p56, %p57
      %p59 = scmp.ne.s32.totalorder %s51, %s53
      %p60 = scmp.eq.s32.totalorder %s22, 1
      %p61 = por %p59, %p60
      %p62 = scmp.ne.s32.totalorder %s53, %s54
      %p63 = scmp.eq.s32.totalorder %s22, 0
      %p64 = por %p62, %p63
      %p65 = scmp.ne.s32.totalorder %s53, %s54
      %p66 = scmp.eq.s32.totalorder %s23, 1
      %p67 = por %p65, %p66
      %p69 = scmp.ne.s32.totalorder %s54, %s68
      %p70 = scmp.eq.s32.totalorder %s23, 0
      %p71 = por %p69, %p70
      %s73 = sadd.s32 %s72, 1
      %p76 = scmp.eq.s32.totalorder %s17, 1
      %p77 = scmp.ne.s32.totalorder %s72, %s74
      %p78 = scmp.eq.s32.totalorder %s17, 0
      %p79 = por %p77, %p78
      %p80 = scmp.ne.s32.totalorder %s72, %s74
      %p81 = scmp.eq.s32.totalorder %s22, 1
      %p82 = por %p80, %p81
      %p83 = scmp.ne.s32.totalorder %s74, %s75
      %p84 = scmp.eq.s32.totalorder %s22, 0
      %p85 = por %p83, %p84
      %p86 = scmp.ne.s32.totalorder %s74, %s75
      %p87 = scmp.eq.s32.totalorder %s23, 1
      %p88 = por %p86, %p87
      %p90 = scmp.ne.s32.totalorder %s75, %s89
      %p91 = scmp.eq.s32.totalorder %s23, 0
      %p92 = por %p90, %p91
      %s93 = ssub.s32 %s17, %s24
      %p94 = scmp.eq.s32.totalorder %s93, 0
      %s96 = sadd.s32 %s95, 1
      %s97 = scalar_select %p94, %s95, %s96
      %p100 = pneg %p94
      %p101 = scmp.eq.s32.totalorder %s17, 1
      %p102 = por %p100, %p101
      %p103 = scmp.ne.s32.totalorder %s95, %s98
      %p104 = scmp.eq.s32.totalorder %s17, 0
      %p105 = por %p103, %p104
      %p106 = scmp.ne.s32.totalorder %s95, %s98
      %p107 = scmp.eq.s32.totalorder %s22, 1
      %p108 = por %p106, %p107
      %p109 = scmp.ne.s32.totalorder %s98, %s99
      %p110 = scmp.eq.s32.totalorder %s22, 0
      %p111 = por %p109, %p110
      %p112 = scmp.ne.s32.totalorder %s98, %s99
      %p113 = scmp.eq.s32.totalorder %s23, 1
      %p114 = por %p112, %p113
      %p116 = scmp.ne.s32.totalorder %s99, %s115
      %p117 = scmp.eq.s32.totalorder %s23, 0
      %p118 = por %p116, %p117
      %p119 = scmp.le.s32.totalorder 1, %s17
      %p120 = scmp.lt.s32.totalorder %s17, 3
      %p121 = pnand %p119, %p120
      %p122 = pneg %p121
      // Predicated region
      $region9: #{tpu_custom_call.1} parent=5 // pred_check
        _
      $region10: #{tpu_custom_call.1} parent=5 // pred_check_branch
        %124 = sbr.rel (%p121) target = $region12
      $region11: #{tpu_custom_call.1} parent=5 // pred_region
        %s125 = ssub.s32 %s17, 1
        // Predicated region
        $region13: #{tpu_custom_call.1} parent=11 // pred_check
          %p126 = pneg %p64
        $region14: #{tpu_custom_call.1} parent=11 // pred_check_branch
          %128 = sbr.rel (%p126) target = $region16
        $region15: #{tpu_custom_call.1} parent=11 // pred_region
          %s130 = ssub.s32 16, 16
          %131 = vsyncadd [#allocation6], %s130
          %s133 = sshll.u32 %s1, 4
          %s134 = int_to_ptr.vmem [resolvable:$true] %s133
          %136 = dma.vmem_to_smem %s134, 16, [#allocation7], [#allocation6]
        $region16: #{tpu_custom_call.1} parent=11 // pred_fallthru
          _
        // Predicated region
        $region17: #{tpu_custom_call.1} parent=11 // pred_check
          %p137 = pneg %p85
        $region18: #{tpu_custom_call.1} parent=11 // pred_check_branch
          %139 = sbr.rel (%p137) target = $region20
        $region19: #{tpu_custom_call.1} parent=11 // pred_region
          %s141 = ssub.s32 16, 16
          %142 = vsyncadd [#allocation9], %s141
          %s144 = sshll.u32 %s2, 4
          %s145 = int_to_ptr.vmem [resolvable:$true] %s144
          %147 = dma.vmem_to_smem %s145, 16, [#allocation8], [#allocation9]
        $region20: #{tpu_custom_call.1} parent=11 // pred_fallthru
          _
      $region12: #{tpu_custom_call.1} parent=5 // pred_fallthru
        _
      %p148 = scmp.lt.s32.totalorder %s17, 2
      // Predicated region
      $region21: #{tpu_custom_call.1} parent=5 // pred_check
        %p149 = pneg %p148
      $region22: #{tpu_custom_call.1} parent=5 // pred_check_branch
        %151 = sbr.rel (%p149) target = $region24
      $region23: #{tpu_custom_call.1} parent=5 // pred_region
        // Predicated region
        $region25: #{tpu_custom_call.1} parent=23 // pred_check
          %p152 = pneg %p37
        $region26: #{tpu_custom_call.1} parent=23 // pred_check_branch
          %154 = sbr.rel (%p152) target = $region28
        $region27: #{tpu_custom_call.1} parent=23 // pred_region
          %s155 = sand.u32 %s27, 1
          %s156 = scalar_lea.sflag [#allocation4], %s155
          %s157 = sand.u32 %s27, 1
          %s158 = smul.addr %s157, 16
          %s159 = scalar_lea.vmem [#allocation3], %s158
          %s161 = ssub.s32 256, 256
          %162 = vsyncadd %s156, %s161
          %s163 = smul.addr %s17, 2
          %s164 = smul.addr %s163, 128
          %s165 = scalar_lea.hbm %s0, %s164
          %s166 = sshll.u32 %s159, 4
          %s167 = int_to_ptr.vmem [resolvable:$true] %s166
          %172 = dma.hbm_to_vmem [thread:$0]  %s165, 256, %s167, %s156, 128, 128, 8
        $region28: #{tpu_custom_call.1} parent=23 // pred_fallthru
          _
      $region24: #{tpu_custom_call.1} parent=5 // pred_fallthru
        _
      %p173 = scmp.le.s32.totalorder 1, %s17
      %p174 = scmp.lt.s32.totalorder %s17, 3
      %p175 = pnand %p173, %p174
      %p176 = pneg %p175
      // Predicated region
      $region29: #{tpu_custom_call.1} parent=5 // pred_check
        _
      $region30: #{tpu_custom_call.1} parent=5 // pred_check_branch
        %178 = sbr.rel (%p175) target = $region32
      $region31: #{tpu_custom_call.1} parent=5 // pred_region
        %s179 = ssub.s32 %s17, 1
        %s180 = sand.u32 %s30, 1
        %s181 = scalar_lea.sflag [#allocation4], %s180
        %s182 = sand.u32 %s30, 1
        %s183 = smul.addr %s182, 16
        %s184 = scalar_lea.vmem [#allocation3], %s183
        // Predicated region
        $region33: #{tpu_custom_call.1} parent=31 // pred_check
          %p185 = pneg %p43
        $region34: #{tpu_custom_call.1} parent=31 // pred_check_branch
          %187 = sbr.rel (%p185) target = $region36
        $region35: #{tpu_custom_call.1} parent=31 // pred_region
          %188 = dma.done %s181, 256
        $region36: #{tpu_custom_call.1} parent=31 // pred_fallthru
          _
        // Predicated region
        $region37: #{tpu_custom_call.1} parent=31 // pred_check
          %p189 = pneg %p64
        $region38: #{tpu_custom_call.1} parent=31 // pred_check_branch
          %191 = sbr.rel (%p189) target = $region40
        $region39: #{tpu_custom_call.1} parent=31 // pred_region
          %192 = dma.done [#allocation6], 16
        $region40: #{tpu_custom_call.1} parent=31 // pred_fallthru
          _
        // Predicated region
        $region41: #{tpu_custom_call.1} parent=31 // pred_check
          %p193 = pneg %p85
        $region42: #{tpu_custom_call.1} parent=31 // pred_check_branch
          %195 = sbr.rel (%p193) target = $region44
        $region43: #{tpu_custom_call.1} parent=31 // pred_region
          %196 = dma.done [#allocation9], 16
        $region44: #{tpu_custom_call.1} parent=31 // pred_fallthru
          _
        %197 = sfence
        %s198 = sand.u32 %s30, 1
        %s199 = scalar_lea.sflag [#allocation4], %s198
        %s200 = sand.u32 %s30, 1
        %s201 = smul.addr %s200, 16
        %s202 = scalar_lea.vmem [#allocation3], %s201
        %p203 = pneg %p43
        %p204 = pneg %p40
        %p205 = pneg %p64
        %p206 = pneg %p61
        %p207 = pneg %p85
        %p208 = pneg %p82
        %p209 = pneg %p111
        %p210 = pneg %p108
        %s211 = sand.u32 %s98, 1
        %s212 = scalar_lea.sflag [#allocation5], %s211
        %s213 = sand.u32 %s98, 1
        %s214 = smul.addr %s213, 128
        %s215 = scalar_lea.vmem [#allocation10], %s214
        %v216 = vld [vmem:[%s184] sm:$0xff]
        %v217 = vld [vmem:[%s184 + $0x8] sm:$0xff]
        %vm218 = vcmask 138240
        %219 = vst.msk [vmem:[#allocation2] sm:$0xff] %vm218, 0.0
        %220 = vst.msk [vmem:[#allocation2 + $0x8] sm:$0xff] %vm218, 0.0
        %vm221 = vcmask 131072
        %222 = vst.msk [vmem:[#allocation2 + $0x10] sm:$0x1] %vm221, 0.0
        %vm223 = vcmask 130048
        %224 = vst.msk [vmem:[#allocation2] sm:$0xff] %vm223, %v216
        %225 = vst.msk [vmem:[#allocation2 + $0x8] sm:$0xff] %vm223, %v217
        %v226 = vld [vmem:[#allocation2] sm:$0xff]
        %v227 = vld [vmem:[#allocation2 + $0x8] sm:$0xff]
        %v228 = vld [vmem:[#allocation2 + $0x1] sm:$0xff]
        %v229 = vld [vmem:[#allocation2 + $0x9] sm:$0xff]
        %s230 = sld [smem:[#allocation7]]
        %s231 = sld [smem:[#allocation7 + $0x1]]
        %s232 = sld [smem:[#allocation7 + $0x2]]
        %s233 = sld [smem:[#allocation7 + $0x3]]
        %s234 = sld [smem:[#allocation7 + $0x4]]
        %s235 = sld [smem:[#allocation7 + $0x5]]
        %s236 = sld [smem:[#allocation7 + $0x6]]
        %s237 = sld [smem:[#allocation7 + $0x7]]
        %s238 = sld [smem:[#allocation7 + $0x8]]
        %s239 = sld [smem:[#allocation8]]
        %s240 = sadd.f32 %s239, 3.0
        %v241 = vstv %s234
        %v242 = vmul.f32 %v241, %v216
        %v243 = vmul.f32 %v241, %v217
        %v244 = vstv %s233
        %v245 = vmul.f32 %v244, %v216
        %v246 = vmul.f32 %v244, %v217
        %v247 = vstv %s235
        %v248 = vmul.f32 %v247, %v226
        %v249 = vmul.f32 %v247, %v227
        %252 = vrot.lane.b32.xlu0 %v248, 127
        %v253 = vpop.permute.xlu0 %252
        %254 = vrot.lane.b32.xlu0 %v249, 127
        %v255 = vpop.permute.xlu0 %254
        %v258 = vadd.f32 %v245, %v253
        %v259 = vadd.f32 %v246, %v255
        %v260 = vstv %s231
        %v261 = vmul.f32 %v260, %v216
        %v262 = vmul.f32 %v260, %v217
        %v263 = vstv %s237
        %v264 = vmul.f32 %v263, %v228
        %v265 = vmul.f32 %v263, %v229
        %v266 = vadd.f32 %v261, %v264
        %v267 = vadd.f32 %v262, %v265
        %v268 = vstv %s230
        %v269 = vmul.f32 %v268, %v216
        %v270 = vmul.f32 %v268, %v217
        %v271 = vstv %s232
        %v272 = vmul.f32 %v271, %v226
        %v273 = vmul.f32 %v271, %v227
        %276 = vrot.lane.b32.xlu0 %v272, 127
        %v277 = vpop.permute.xlu0 %276
        %278 = vrot.lane.b32.xlu0 %v273, 127
        %v279 = vpop.permute.xlu0 %278
        %v282 = vadd.f32 %v269, %v277
        %v283 = vadd.f32 %v270, %v279
        %v284 = vstv %s236
        %v285 = vmul.f32 %v284, %v228
        %v286 = vmul.f32 %v284, %v229
        %v287 = vadd.f32 %v282, %v285
        %v288 = vadd.f32 %v283, %v286
        %v289 = vstv %s238
        %v290 = vmul.f32 %v289, %v228
        %v291 = vmul.f32 %v289, %v229
        %294 = vrot.lane.b32.xlu0 %v290, 127
        %v295 = vpop.permute.xlu0 %294
        %296 = vrot.lane.b32.xlu0 %v291, 127
        %v297 = vpop.permute.xlu0 %296
        %v300 = vadd.f32 %v287, %v295
        %v301 = vadd.f32 %v288, %v297
        %v302 = vstv %s240
        %v303 = vadd.f32 %v242, %v302
        %v304 = vadd.f32 %v243, %v302
        %v305 = vmax.f32 %v303, 0.0
        %v306 = vmax.f32 %v304, 0.0
        %v307 = vmin.f32 %v305, 6.0
        %v308 = vmin.f32 %v306, 6.0
        %v309 = vmul.f32 %v307, 0.16666667
        %v310 = vmul.f32 %v308, 0.16666667
        %311 = vst.msk [vmem:[%s215] sm:$0xff] %vm223, %v309
        %312 = vst.msk [vmem:[%s215 + $0x8] sm:$0xff] %vm223, %v310
        %v313 = vadd.f32 %v258, %v302
        %v314 = vadd.f32 %v259, %v302
        %v315 = vmax.f32 %v313, 0.0
        %v316 = vmax.f32 %v314, 0.0
        %v317 = vmin.f32 %v315, 6.0
        %v318 = vmin.f32 %v316, 6.0
        %v319 = vmul.f32 %v317, 0.16666667
        %v320 = vmul.f32 %v318, 0.16666667
        %s321 = scalar_lea.vmem %s215, 16 [#allocation10]
        %322 = vst.msk [vmem:[%s321] sm:$0xff] %vm223, %v319
        %323 = vst.msk [vmem:[%s321 + $0x8] sm:$0xff] %vm223, %v320
        %v324 = vadd.f32 %v266, %v302
        %v325 = vadd.f32 %v267, %v302
        %v326 = vmax.f32 %v324, 0.0
        %v327 = vmax.f32 %v325, 0.0
        %v328 = vmin.f32 %v326, 6.0
        %v329 = vmin.f32 %v327, 6.0
        %v330 = vmul.f32 %v328, 0.16666667
        %v331 = vmul.f32 %v329, 0.16666667
        %s332 = scalar_lea.vmem %s215, 32 [#allocation10]
        %333 = vst.msk [vmem:[%s332] sm:$0xff] %vm223, %v330
        %334 = vst.msk [vmem:[%s332 + $0x8] sm:$0xff] %vm223, %v331
        %v335 = vadd.f32 %v300, %v302
        %v336 = vadd.f32 %v301, %v302
        %v337 = vmax.f32 %v335, 0.0
        %v338 = vmax.f32 %v336, 0.0
        %v339 = vmin.f32 %v337, 6.0
        %v340 = vmin.f32 %v338, 6.0
        %v341 = vmul.f32 %v339, 0.16666667
        %v342 = vmul.f32 %v340, 0.16666667
        %s343 = scalar_lea.vmem %s215, 48 [#allocation10]
        %344 = vst.msk [vmem:[%s343] sm:$0xff] %vm223, %v341
        %345 = vst.msk [vmem:[%s343 + $0x8] sm:$0xff] %vm223, %v342
        %s346 = sld [smem:[#allocation7 + $0x9]]
        %s347 = sld [smem:[#allocation7 + $0xa]]
        %s348 = sld [smem:[#allocation7 + $0xb]]
        %s349 = sld [smem:[#allocation7 + $0xc]]
        %s350 = sld [smem:[#allocation7 + $0xd]]
        %s351 = sld [smem:[#allocation7 + $0xe]]
        %s352 = sld [smem:[#allocation7 + $0xf]]
        %s353 = sld [smem:[#allocation7 + $0x10]]
        %s354 = sld [smem:[#allocation7 + $0x11]]
        %s355 = sld [smem:[#allocation8 + $0x1]]
        %s356 = sadd.f32 %s355, 3.0
        %v357 = vstv %s350
        %v358 = vmul.f32 %v357, %v216
        %v359 = vmul.f32 %v357, %v217
        %v360 = vstv %s349
        %v361 = vmul.f32 %v360, %v216
        %v362 = vmul.f32 %v360, %v217
        %v363 = vstv %s351
        %v364 = vmul.f32 %v363, %v226
        %v365 = vmul.f32 %v363, %v227
        %368 = vrot.lane.b32.xlu0 %v364, 127
        %v369 = vpop.permute.xlu0 %368
        %370 = vrot.lane.b32.xlu0 %v365, 127
        %v371 = vpop.permute.xlu0 %370
        %v374 = vadd.f32 %v361, %v369
        %v375 = vadd.f32 %v362, %v371
        %v376 = vstv %s347
        %v377 = vmul.f32 %v376, %v216
        %v378 = vmul.f32 %v376, %v217
        %v379 = vstv %s353
        %v380 = vmul.f32 %v379, %v228
        %v381 = vmul.f32 %v379, %v229
        %v382 = vadd.f32 %v377, %v380
        %v383 = vadd.f32 %v378, %v381
        %v384 = vstv %s346
        %v385 = vmul.f32 %v384, %v216
        %v386 = vmul.f32 %v384, %v217
        %v387 = vstv %s348
        %v388 = vmul.f32 %v387, %v226
        %v389 = vmul.f32 %v387, %v227
        %392 = vrot.lane.b32.xlu0 %v388, 127
        %v393 = vpop.permute.xlu0 %392
        %394 = vrot.lane.b32.xlu0 %v389, 127
        %v395 = vpop.permute.xlu0 %394
        %v398 = vadd.f32 %v385, %v393
        %v399 = vadd.f32 %v386, %v395
        %v400 = vstv %s352
        %v401 = vmul.f32 %v400, %v228
        %v402 = vmul.f32 %v400, %v229
        %v403 = vadd.f32 %v398, %v401
        %v404 = vadd.f32 %v399, %v402
        %v405 = vstv %s354
        %v406 = vmul.f32 %v405, %v228
        %v407 = vmul.f32 %v405, %v229
        %410 = vrot.lane.b32.xlu0 %v406, 127
        %v411 = vpop.permute.xlu0 %410
        %412 = vrot.lane.b32.xlu0 %v407, 127
        %v413 = vpop.permute.xlu0 %412
        %v416 = vadd.f32 %v403, %v411
        %v417 = vadd.f32 %v404, %v413
        %v418 = vstv %s356
        %v419 = vadd.f32 %v358, %v418
        %v420 = vadd.f32 %v359, %v418
        %v421 = vmax.f32 %v419, 0.0
        %v422 = vmax.f32 %v420, 0.0
        %v423 = vmin.f32 %v421, 6.0
        %v424 = vmin.f32 %v422, 6.0
        %v425 = vmul.f32 %v423, 0.16666667
        %v426 = vmul.f32 %v424, 0.16666667
        %s427 = scalar_lea.vmem %s215, 64 [#allocation10]
        %428 = vst.msk [vmem:[%s427] sm:$0xff] %vm223, %v425
        %429 = vst.msk [vmem:[%s427 + $0x8] sm:$0xff] %vm223, %v426
        %v430 = vadd.f32 %v374, %v418
        %v431 = vadd.f32 %v375, %v418
        %v432 = vmax.f32 %v430, 0.0
        %v433 = vmax.f32 %v431, 0.0
        %v434 = vmin.f32 %v432, 6.0
        %v435 = vmin.f32 %v433, 6.0
        %v436 = vmul.f32 %v434, 0.16666667
        %v437 = vmul.f32 %v435, 0.16666667
        %s438 = scalar_lea.vmem %s215, 80 [#allocation10]
        %439 = vst.msk [vmem:[%s438] sm:$0xff] %vm223, %v436
        %440 = vst.msk [vmem:[%s438 + $0x8] sm:$0xff] %vm223, %v437
        %v441 = vadd.f32 %v382, %v418
        %v442 = vadd.f32 %v383, %v418
        %v443 = vmax.f32 %v441, 0.0
        %v444 = vmax.f32 %v442, 0.0
        %v445 = vmin.f32 %v443, 6.0
        %v446 = vmin.f32 %v444, 6.0
        %v447 = vmul.f32 %v445, 0.16666667
        %v448 = vmul.f32 %v446, 0.16666667
        %s449 = scalar_lea.vmem %s215, 96 [#allocation10]
        %450 = vst.msk [vmem:[%s449] sm:$0xff] %vm223, %v447
        %451 = vst.msk [vmem:[%s449 + $0x8] sm:$0xff] %vm223, %v448
        %v452 = vadd.f32 %v416, %v418
        %v453 = vadd.f32 %v417, %v418
        %v454 = vmax.f32 %v452, 0.0
        %v455 = vmax.f32 %v453, 0.0
        %v456 = vmin.f32 %v454, 6.0
        %v457 = vmin.f32 %v455, 6.0
        %v458 = vmul.f32 %v456, 0.16666667
        %v459 = vmul.f32 %v457, 0.16666667
        %s460 = scalar_lea.vmem %s215, 112 [#allocation10]
        %461 = vst.msk [vmem:[%s460] sm:$0xff] %vm223, %v458
        %462 = vst.msk [vmem:[%s460 + $0x8] sm:$0xff] %vm223, %v459
        %s463 = sand.u32 %s98, 1
        %s464 = scalar_lea.sflag [#allocation5], %s463
        %s465 = sand.u32 %s98, 1
        %s466 = smul.addr %s465, 128
        %s467 = scalar_lea.vmem [#allocation10], %s466
        // Predicated region
        $region45: #{tpu_custom_call.1} parent=31 // pred_check
          %p468 = pneg %p108
        $region46: #{tpu_custom_call.1} parent=31 // pred_check_branch
          %470 = sbr.rel (%p468) target = $region48
        $region47: #{tpu_custom_call.1} parent=31 // pred_region
          %s472 = ssub.s32 2048, 2048
          %473 = vsyncadd %s464, %s472
          %s474 = smul.addr %s22, 16
          %s475 = smul.addr %s474, 128
          %s476 = scalar_lea.hbm %s3, %s475
          %s477 = sshll.u32 %s467, 4
          %s478 = int_to_ptr.vmem [resolvable:$true] %s477
          %483 = dma.vmem_to_hbm [thread:$0]  %s478, 2048, %s476, %s464, 128, 128, 8
        $region48: #{tpu_custom_call.1} parent=31 // pred_fallthru
          _
      $region32: #{tpu_custom_call.1} parent=5 // pred_fallthru
        _
      %p484 = scmp.le.s32.totalorder 2, %s17
      // Predicated region
      $region49: #{tpu_custom_call.1} parent=5 // pred_check
        %p485 = pneg %p484
      $region50: #{tpu_custom_call.1} parent=5 // pred_check_branch
        %487 = sbr.rel (%p485) target = $region52
      $region51: #{tpu_custom_call.1} parent=5 // pred_region
        %s488 = ssub.s32 %s17, 2
        // Predicated region
        $region53: #{tpu_custom_call.1} parent=51 // pred_check
          %p489 = pneg %p114
        $region54: #{tpu_custom_call.1} parent=51 // pred_check_branch
          %491 = sbr.rel (%p489) target = $region56
        $region55: #{tpu_custom_call.1} parent=51 // pred_region
          %s492 = sand.u32 %s99, 1
          %s493 = scalar_lea.sflag [#allocation5], %s492
          %s494 = sand.u32 %s99, 1
          %s495 = smul.addr %s494, 128
          %s496 = scalar_lea.vmem [#allocation10], %s495
          %497 = dma.done %s493, 2048
        $region56: #{tpu_custom_call.1} parent=51 // pred_fallthru
          _
      $region52: #{tpu_custom_call.1} parent=5 // pred_fallthru
        _
    $region6: #{tpu_custom_call.1} parent=1 // loop_footer
      %s21 = sadd.s32 1, %s17
    $region7: #{tpu_custom_call.1} parent=1 // loop_footer_branch
      %16 = sbr.rel target = $region3
    $region8: #{tpu_custom_call.1} parent=1 // loop_exit
      _
    %498 = vsyncpa [#allocation4], 1
    %s499 = scalar_lea.sflag [#allocation4], 1
    %500 = vsyncpa %s499, 1
    %501 = vsyncpa [#allocation5], 1
    %s502 = scalar_lea.sflag [#allocation5], 1
    %503 = vsyncpa %s502, 1
    %504 = vsyncpa [#allocation6], 1
    %s505 = scalar_lea.sflag [#allocation6], 1
    %506 = vsyncpa %s505, 1
    %507 = vsyncpa [#allocation9], 1

</llo_original>
